<compile_context>
chip_gen: v7x
topology: tpu7x:2x2x1
jax: 0.10.0
libtpu: 0.0.40
codegen_flags: <defaults>
</compile_context>

<pallas_src>
import numpy as np
import jax
import jax.numpy as jnp
from jax import lax
from jax.experimental import pallas as pl
from jax.experimental.pallas import tpu as pltpu

SCENE_PT_MLP = [3, 128, 256]
SCENE_VOX_MLP = [256, 512, 1024, 512]

_SENTINEL = np.int32(1 << 30)   # "invalid / padding point" voxel id


def _round_up(x, m):
    return (x + m - 1) // m * m


def _default_vmem_limit():
    try:
        info = pltpu.get_tpu_info()
        cap = getattr(info, "vmem_capacity_bytes", None)
        if cap:
            return int(cap) * 3 // 4          # ~96 MiB on v5e/v6e, ~48 MiB on v7x
    except Exception:
        pass
    return 64 * 1024 * 1024


_VMEM_LIMIT_BYTES = _default_vmem_limit()


def _cparams(sem):
    return pltpu.CompilerParams(dimension_semantics=sem,
                                vmem_limit_bytes=_VMEM_LIMIT_BYTES)


# --------------------------------------------------------------------------
# Fused point MLP: relu(relu(x @ w1 + b1) @ w2 + b2)  -> bf16
# --------------------------------------------------------------------------
def _pt_mlp_kernel(x_ref, w1_ref, b1_ref, w2_ref, b2_ref, o_ref):
    h = jnp.dot(x_ref[...], w1_ref[...], preferred_element_type=jnp.float32)
    h = jnp.maximum(h + b1_ref[...], 0.0)
    y = jnp.dot(h.astype(jnp.bfloat16), w2_ref[...],
                preferred_element_type=jnp.float32)
    y = jnp.maximum(y + b2_ref[...], 0.0)
    o_ref[...] = y.astype(o_ref.dtype)


def pallas_point_mlp(x, w1, b1, w2, b2, tm=512):
    """x: (M, K1) bf16 (K1 zero-padded to 8); weights bf16, biases f32 -> bf16."""
    M, K1 = x.shape
    C1, C2 = w1.shape[1], w2.shape[1]
    tm = min(tm, _round_up(M, 256))
    Mp = _round_up(M, tm)
    xp = x if Mp == M else jnp.zeros((Mp, K1), x.dtype).at[:M].set(x)
    out = pl.pallas_call(
        _pt_mlp_kernel,
        out_shape=jax.ShapeDtypeStruct((Mp, C2), jnp.bfloat16),
        grid_spec=pltpu.PrefetchScalarGridSpec(
            num_scalar_prefetch=0,
            grid=(Mp // tm,),
            in_specs=[
                pl.BlockSpec((tm, K1), lambda i: (i, 0)),
                pl.BlockSpec((K1, C1), lambda i: (0, 0)),
                pl.BlockSpec((1, C1), lambda i: (0, 0)),
                pl.BlockSpec((C1, C2), lambda i: (0, 0)),
                pl.BlockSpec((1, C2), lambda i: (0, 0)),
            ],
            out_specs=pl.BlockSpec((tm, C2), lambda i: (i, 0)),
        ),
        compiler_params=_cparams(("parallel",)),
    )(xp, w1, b1, w2, b2)
    return out[:M]


# --------------------------------------------------------------------------
# Sorted / bucketed scatter-max of point features into voxels
# --------------------------------------------------------------------------
def _build_scatter_schedule(flat_sorted, Vp, tv, tn):
    """Work list for the sorted scatter.  flat_sorted: (B, Np) int32 ascending,
    invalid/padding entries >= Vp.  Returns (vtile, nblock, is_first), each
    (B, W) int32 with W a static upper bound on work items per batch."""
    B, Np = flat_sorted.shape
    n_tiles = Vp // tv
    n_blocks = Np // tn
    W = n_blocks + 2 * n_tiles

    tile_starts = jnp.arange(n_tiles + 1, dtype=jnp.int32) * tv
    bnd = jax.vmap(
        lambda s: jnp.searchsorted(s, tile_starts, side='left'))(flat_sorted)
    bnd = bnd.astype(jnp.int32)                              # (B, n_tiles + 1)
    start, end = bnd[:, :-1], bnd[:, 1:]
    count = end - start
    first_blk = jnp.minimum(start, Np - 1) // tn
    last_blk = jnp.where(count > 0, jnp.maximum(end - 1, 0) // tn, first_blk)
    nblk = jnp.where(count > 0, last_blk - first_blk + 1, 1)  # >= 1
    cum = jnp.cumsum(nblk, axis=1) - nblk                     # exclusive prefix
    total = cum[:, -1] + nblk[:, -1]                          # (B,)

    w_ids = jnp.broadcast_to(jnp.arange(W, dtype=jnp.int32)[None, :], (B, W))
    vtile = jax.vmap(
        lambda c, q: jnp.searchsorted(c, q, side='right'))(cum, w_ids)
    vtile = jnp.clip(vtile.astype(jnp.int32) - 1, 0, n_tiles - 1)
    local = w_ids - jnp.take_along_axis(cum, vtile, axis=1)
    nblock = jnp.take_along_axis(first_blk, vtile, axis=1) + local
    is_first = (local == 0)

    # Padding work items repeat the last real one (max is idempotent -> no-op).
    valid = w_ids < total[:, None]
    last_idx = jnp.maximum(total - 1, 0)[:, None]
    last_v = jnp.take_along_axis(vtile, last_idx, axis=1)
    last_n = jnp.take_along_axis(nblock, last_idx, axis=1)
    vtile = jnp.where(valid, vtile, last_v)
    nblock = jnp.clip(jnp.where(valid, nblock, last_n), 0, n_blocks - 1)
    is_first = jnp.where(valid, is_first, False)
    return (vtile.astype(jnp.int32), nblock.astype(jnp.int32),
            is_first.astype(jnp.int32))


def _scatter_max_kernel(vt_ref, nb_ref, fi_ref, inds_ref, feat_ref, o_ref):
    b = pl.program_id(0)
    w = pl.program_id(1)
    tv = o_ref.shape[1]

    @pl.when(fi_ref[b, w] == 1)              # first work item of this voxel tile
    def _():
        o_ref[...] = jnp.zeros_like(o_ref)

    ids = inds_ref[0]                        # (1, tn) int32 (sorted voxel ids)
    f = feat_ref[0]                          # (tn, C) bf16 (post-ReLU, >= 0)
    v0 = vt_ref[b, w] * tv
    zero = jnp.zeros((), f.dtype)
    for g in range(tv // 8):                 # 8 voxel rows per chunk
        vrow = v0 + g * 8 + lax.broadcasted_iota(jnp.int32, (8, 1), 0)
        mask = ids == vrow                   # (8, tn)
        chunk = jnp.max(jnp.where(mask[:, :, None], f[None, :, :], zero), axis=1)
        sl = slice(g * 8, (g + 1) * 8)
        o_ref[0, sl, :] = jnp.maximum(o_ref[0, sl, :], chunk.astype(o_ref.dtype))


def pallas_scatter_max(flat_sorted, feat_sorted, num_vox, tv=64, tn=128):
    """flat_sorted: (B, N) int32 ascending; feat_sorted: (B, N, C) bf16.
    Returns (B, num_vox, C) per-voxel max (0 for empty voxels)."""
    B, N, C = feat_sorted.shape
    assert tv % 8 == 0
    Vp = _round_up(max(num_vox, tv), tv)
    Np = _round_up(N, tn)
    if Np != N:
        flat_p = jnp.concatenate(
            [flat_sorted, jnp.full((B, Np - N), _SENTINEL, jnp.int32)], axis=1)
        feat_p = jnp.concatenate(
            [feat_sorted, jnp.zeros((B, Np - N, C), feat_sorted.dtype)], axis=1)
    else:
        flat_p, feat_p = flat_sorted, feat_sorted

    vtile, nblock, is_first = _build_scatter_schedule(flat_p, Vp, tv, tn)
    Wk = vtile.shape[1]
    inds = flat_p[:, None, :]                                 # (B, 1, Np)

    out = pl.pallas_call(
        _scatter_max_kernel,
        out_shape=jax.ShapeDtypeStruct((B, Vp, C), feat_p.dtype),
        grid_spec=pltpu.PrefetchScalarGridSpec(
            num_scalar_prefetch=3,
            grid=(B, Wk),
            in_specs=[
                pl.BlockSpec((1, 1, tn),
                             lambda b, w, vt, nb, fi: (b, 0, nb[b, w])),
                pl.BlockSpec((1, tn, C),
                             lambda b, w, vt, nb, fi: (b, nb[b, w], 0)),
            ],
            out_specs=pl.BlockSpec((1, tv, C),
                                   lambda b, w, vt, nb, fi: (b, vt[b, w], 0)),
        ),
        compiler_params=_cparams(("parallel", "arbitrary")),
    )(vtile, nblock, is_first, inds, feat_p)
    return out[:, :num_vox, :]


# --------------------------------------------------------------------------
# Fused Conv3d(3x3x3, pad=1) + bias + ReLU + MaxPool3d(2, 2)
# --------------------------------------------------------------------------
def _conv3_relu_pool_kernel(x_ref, w_ref, b_ref, o_ref, xpad_ref, acc_ref):
    ci = pl.program_id(1)
    _, D, H, W, ck = x_ref.shape
    cout = b_ref.shape[-1]

    @pl.when(ci == 0)
    def _():
        xpad_ref[...] = jnp.zeros_like(xpad_ref)                 # zero halo
        acc_ref[...] = jnp.broadcast_to(b_ref[...], acc_ref.shape)  # bias init

    # in-kernel zero-padding: no XLA-side jnp.pad HBM pass
    xpad_ref[1:D + 1, 1:H + 1, 1:W + 1, :] = x_ref[0]

    for kd in range(3):
        for kh in range(3):
            xs = xpad_ref[kd:kd + D, kh:kh + H, :, :].reshape(
                D * H * (W + 2), ck)                             # bf16 LHS
            r = jnp.dot(xs, w_ref[kd, kh],                       # 3 kw taps fused
                        preferred_element_type=jnp.float32)
            r = r.reshape(D, H, W + 2, 3 * cout)
            for kw in range(3):
                acc_ref[...] += r[:, :, kw:kw + W,
                                  kw * cout:(kw + 1) * cout].reshape(
                                      D * H * W, cout)

    @pl.when(ci == pl.num_programs(1) - 1)
    def _():
        Do, Ho, Wo = D // 2, H // 2, W // 2
        a = jnp.maximum(acc_ref[...], 0.0)                       # ReLU
        a = jnp.max(a.reshape(D * H * Wo, 2, cout), axis=1)      # pool W
        a = jnp.max(a.reshape(D * Ho, 2, Wo, cout), axis=1)      # pool H
        a = jnp.max(a.reshape(Do, 2, Ho, Wo, cout), axis=1)      # pool D
        o_ref[0] = a.astype(o_ref.dtype)


def conv3d_relu_maxpool(x, w_slab, b, out_dtype=jnp.bfloat16, ci_blk=256):
    """x: (B, D, H, W, Cin); w_slab: (3, 3, Cin, 3*Cout) bf16 (kw grouped along
    output columns); b: (1, Cout) f32.  Returns (B, D//2, H//2, W//2, Cout).

    # TODO(synk): large voxel grids need depth tiling with a 1-voxel halo
    # (manual DMA) to fit v7x's 64 MiB VMEM; scene grids here fit whole.
    """
    B, D, H, W, Cin = x.shape
    Cout = w_slab.shape[-1] // 3
    ci_blk = min(ci_blk, Cin)
    assert Cin % ci_blk == 0
    assert D % 2 == 0 and H % 2 == 0 and W % 2 == 0
    Do, Ho, Wo = D // 2, H // 2, W // 2
    return pl.pallas_call(
        _conv3_relu_pool_kernel,
        out_shape=jax.ShapeDtypeStruct((B, Do, Ho, Wo, Cout), out_dtype),
        grid_spec=pltpu.PrefetchScalarGridSpec(
            num_scalar_prefetch=0,
            grid=(B, Cin // ci_blk),
            in_specs=[
                pl.BlockSpec((1, D, H, W, ci_blk),
                             lambda bb, ci: (bb, 0, 0, 0, ci)),
                pl.BlockSpec((3, 3, ci_blk, 3 * Cout),
                             lambda bb, ci: (0, 0, ci, 0)),
                pl.BlockSpec((1, Cout), lambda bb, ci: (0, 0)),
            ],
            out_specs=pl.BlockSpec((1, Do, Ho, Wo, Cout),
                                   lambda bb, ci: (bb, 0, 0, 0, 0)),
            scratch_shapes=[
                pltpu.VMEM((D + 2, H + 2, W + 2, ci_blk), jnp.bfloat16),
                pltpu.VMEM((D * H * W, Cout), jnp.float32),
            ]),
        compiler_params=_cparams(("parallel", "arbitrary")),
    )(x.astype(jnp.bfloat16), w_slab, b)


# --------------------------------------------------------------------------
# ConvTranspose3d(kernel=2, stride=2); output written per (kd, kh) group
# --------------------------------------------------------------------------
def _convt2_kernel(x_ref, w_ref, b_ref, o_ref, acc_ref):
    k = pl.program_id(2)

    @pl.when(k == 0)
    def _():
        acc_ref[...] = jnp.broadcast_to(b_ref[...], acc_ref.shape)  # bias init

    _, D, H, W, ck = x_ref.shape
    xf = x_ref[0].reshape(D * H * W, ck)
    acc_ref[...] += jnp.dot(xf, w_ref[...], preferred_element_type=jnp.float32)

    @pl.when(k == pl.num_programs(2) - 1)
    def _():
        C = o_ref.shape[-1]
        # accumulator columns for this (kd, kh) group are ordered (kw, c):
        # one reshape interleaves kw into the output W axis.
        o_ref[0] = acc_ref[...].reshape(D, H, 2 * W, C).astype(o_ref.dtype)


def convtranspose3d_2x2x2(x, w_flat, b_tiled, cout, ck_blk=256):
    """x: (B, D, H, W, Cin); w_flat: (Cin, 8*Cout) bf16 with columns ordered
    (kd, kh, kw, c); b_tiled: (1, 8*Cout) f32.  Returns (B, 2D, 2H, 2W, Cout)."""
    B, D, H, W, Cin = x.shape
    ck_blk = min(ck_blk, Cin)
    assert Cin % ck_blk == 0
    two_c = 2 * cout
    out = pl.pallas_call(
        _convt2_kernel,
        out_shape=jax.ShapeDtypeStruct((B, D, 2, H, 2, 2 * W, cout), jnp.float32),
        grid_spec=pltpu.PrefetchScalarGridSpec(
            num_scalar_prefetch=0,
            grid=(B, 4, Cin // ck_blk),                 # (batch, (kd,kh) group, Cin)
            in_specs=[
                pl.BlockSpec((1, D, H, W, ck_blk),
                             lambda b, g, k: (b, 0, 0, 0, k)),
                pl.BlockSpec((ck_blk, two_c), lambda b, g, k: (k, g)),
                pl.BlockSpec((1, two_c), lambda b, g, k: (0, g)),
            ],
            out_specs=pl.BlockSpec(
                (1, D, pl.Squeezed(), H, pl.Squeezed(), 2 * W, cout),
                lambda b, g, k: (b, 0, g // 2, 0, g % 2, 0, 0)),
            scratch_shapes=[pltpu.VMEM((D * H * W, two_c), jnp.float32)],
        ),
        compiler_params=_cparams(("parallel", "parallel", "arbitrary")),
    )(x.astype(jnp.bfloat16), w_flat, b_tiled)
    # (d,kd), (h,kh), (w,kw) are already interleaved in memory order -> free reshape
    return out.reshape(B, 2 * D, 2 * H, 2 * W, cout)


# --------------------------------------------------------------------------
# SceneCollisionEncoder (JAX / Pallas)
# --------------------------------------------------------------------------
def _kaiming(key, shape, fan_in):
    return jax.random.normal(key, shape, jnp.float32) * np.sqrt(2.0 / fan_in)


class SceneCollisionEncoderPallas:
    def __init__(self, bounds, vox_size, key):
        bounds = np.asarray(bounds, dtype=np.float32)
        vox_size = np.asarray(vox_size, dtype=np.float32)
        self.bounds = jnp.asarray(bounds)
        self.vox_size = jnp.asarray(vox_size)
        self.num_voxels = ((bounds[1] - bounds[0]) / vox_size).astype(np.int64)

        ks = jax.random.split(key, 6)
        # Point MLP: Conv1d(k=1) == per-point matmul; first-layer K padded 3 -> 8.
        w1 = _kaiming(ks[0], (SCENE_PT_MLP[0], SCENE_PT_MLP[1]), SCENE_PT_MLP[0])
        self.w_pt1 = jnp.zeros((8, SCENE_PT_MLP[1]), jnp.bfloat16).at[:3].set(
            w1.astype(jnp.bfloat16))
        self.b_pt1 = jnp.zeros((1, SCENE_PT_MLP[1]), jnp.float32)
        w2 = _kaiming(ks[1], (SCENE_PT_MLP[1], SCENE_PT_MLP[2]), SCENE_PT_MLP[1])
        self.w_pt2 = w2.astype(jnp.bfloat16)
        self.b_pt2 = jnp.zeros((1, SCENE_PT_MLP[2]), jnp.float32)

        # Voxel layers 0, 1: Conv3d(3x3x3, pad=1) + ReLU + MaxPool3d(2,2).
        # Weights pre-packed to (kd, kh, Cin, 3*Cout) slabs (kw along columns).
        self.w_c, self.b_c = [], []
        for i in range(2):
            cin, cout = SCENE_VOX_MLP[i], SCENE_VOX_MLP[i + 1]
            wc = _kaiming(ks[2 + i], (3, 3, 3, cin, cout), 27 * cin)
            slab = jnp.transpose(wc, (0, 1, 3, 2, 4)).reshape(3, 3, cin, 3 * cout)
            self.w_c.append(slab.astype(jnp.bfloat16))
            self.b_c.append(jnp.zeros((1, cout), jnp.float32))

        # Voxel layer 2: ConvTranspose3d(k=2, s=2), no activation.
        # TODO(synk): torch checkpoints store ConvTranspose weights as
        # (Cin, Cout, kD, kH, kW); permute to (Cin, kD, kH, kW, Cout) if loading.
        cin, cout = SCENE_VOX_MLP[2], SCENE_VOX_MLP[3]
        wt = jax.random.normal(ks[4], (cin, 2, 2, 2, cout),
                               jnp.float32) * np.sqrt(1.0 / (cin * 8))
        self.w_ct = wt.reshape(cin, 8 * cout).astype(jnp.bfloat16)
        self.b_ct = jnp.tile(jnp.zeros((1, cout), jnp.float32), (1, 8))
        self.cout_ct = cout

    def __call__(self, scene_pc):
        # scene_pc: (B, N, 3); no extra per-point features (SCENE_PT_MLP[0] == 3)
        B, N, _ = scene_pc.shape
        nv0, nv1, nv2 = [int(v) for v in self.num_voxels]
        V = nv0 * nv1 * nv2

        xyz = scene_pc[..., :3]
        b0, vs = self.bounds[0], self.vox_size
        inds3 = jnp.floor((xyz - b0) / vs).astype(jnp.int32)            # (B,N,3)
        valid = jnp.all(
            (inds3 >= 0) & (inds3 < jnp.array([nv0, nv1, nv2], jnp.int32)),
            axis=-1)
        flat = inds3[..., 0] * (nv1 * nv2) + inds3[..., 1] * nv2 + inds3[..., 2]
        flat = jnp.where(valid, flat, _SENTINEL).astype(jnp.int32)
        # TODO(synk): torch asserts/prints on out-of-range voxel indices; here
        # out-of-range points are masked (sentinel id) and silently dropped.
        centers = inds3.astype(jnp.float32) * vs + vs / 2.0 + b0
        xyz_centered = xyz - centers                                     # (B,N,3)

        # sort points by voxel id BEFORE the MLP -> sorted features for free
        order = jnp.argsort(flat, axis=1)
        flat_s = jnp.take_along_axis(flat, order, axis=1)
        xyz_s = jnp.take_along_axis(xyz_centered, order[..., None], axis=1)

        # fused point MLP (Conv1d k=1 -> matmul + ReLU, twice); K padded 3 -> 8
        xin = jnp.zeros((B * N, 8), jnp.bfloat16).at[:, :3].set(
            xyz_s.reshape(B * N, 3).astype(jnp.bfloat16))
        feat = pallas_point_mlp(xin, self.w_pt1, self.b_pt1,
                                self.w_pt2, self.b_pt2)
        feat = feat.reshape(B, N, -1)                                    # bf16

        # sorted scatter-max of point features into voxels (0 for empty voxels)
        vox = pallas_scatter_max(flat_s, feat, V)                        # (B,V,256)
        vox = vox.reshape(B, nv0, nv1, nv2, -1)                          # NDHWC bf16

        # voxel CNN: fused conv+relu+pool kernels, then conv-transpose
        l1 = conv3d_relu_maxpool(vox, self.w_c[0], self.b_c[0])          # bf16
        l2 = conv3d_relu_maxpool(l1, self.w_c[1], self.b_c[1])           # bf16
        l3 = convtranspose3d_2x2x2(l2, self.w_ct, self.b_ct, self.cout_ct)

        stack = jnp.concatenate([l1.astype(jnp.float32), l3], axis=-1)
        # back to the PyTorch layout (B, C, D*H*W)
        # TODO(synk): this final transpose could be skipped if the downstream
        # consumer accepts channels-last features.
        out = jnp.transpose(stack, (0, 4, 1, 2, 3)).reshape(B, stack.shape[-1], -1)
        return out


if __name__ == "__main__":
    key = jax.random.PRNGKey(0)
    B, N = 2, 128
    bounds = np.array([[0.0, 0.0, 0.0], [1.0, 1.0, 1.0]], dtype=np.float32)
    vox_size = np.array([0.25, 0.25, 0.25], dtype=np.float32)   # -> 4x4x4 voxels

    enc = SceneCollisionEncoderPallas(bounds, vox_size, key)
    scene_pc = jax.random.uniform(jax.random.fold_in(key, 99), (B, N, 3),
                                  dtype=jnp.float32, minval=0.02, maxval=0.98)

    out = enc(scene_pc)
    out = jax.block_until_ready(out)
    assert out.shape == (B, 2 * SCENE_VOX_MLP[-1], (4 // 2) ** 3), out.shape
    assert bool(jnp.all(jnp.isfinite(out)))
    print("KERNEL_OK")
</pallas_src>

<mosaic_0001>
module attributes {stable_mosaic.version = 11 : i64} {
  func.func @_pt_mlp_kernel(%arg0: i32, %arg1: memref<256x8xbf16, #tpu.memory_space<vmem>>, %arg2: memref<8x128xbf16, #tpu.memory_space<vmem>>, %arg3: memref<1x128xf32, #tpu.memory_space<vmem>>, %arg4: memref<128x256xbf16, #tpu.memory_space<vmem>>, %arg5: memref<1x256xf32, #tpu.memory_space<vmem>>, %arg6: memref<256x256xbf16, #tpu.memory_space<vmem>>) attributes {dimension_semantics = [#tpu.dimension_semantics<parallel>], iteration_bounds = array<i64: 1>, scalar_prefetch = 0 : i64, scratch_operands = 0 : i64, tpu.core_type = #tpu.core_type<tc>, window_params = [{transform_indices = @transform_0, window_bounds = array<i64: 256, 8>}, {pipeline_mode = #tpu.pipeline_mode<synchronous>, transform_indices = @transform_1, window_bounds = array<i64: 8, 128>}, {pipeline_mode = #tpu.pipeline_mode<synchronous>, transform_indices = @transform_2, window_bounds = array<i64: 1, 128>}, {pipeline_mode = #tpu.pipeline_mode<synchronous>, transform_indices = @transform_3, window_bounds = array<i64: 128, 256>}, {pipeline_mode = #tpu.pipeline_mode<synchronous>, transform_indices = @transform_4, window_bounds = array<i64: 1, 256>}, {transform_indices = @transform_5, window_bounds = array<i64: 256, 256>}]} {
    %c0 = arith.constant 0 : index
    %c0_0 = arith.constant 0 : index
    %0 = vector.load %arg1[%c0, %c0_0] : memref<256x8xbf16, #tpu.memory_space<vmem>>, vector<256x8xbf16>
    %c0_1 = arith.constant 0 : index
    %c0_2 = arith.constant 0 : index
    %1 = vector.load %arg2[%c0_1, %c0_2] : memref<8x128xbf16, #tpu.memory_space<vmem>>, vector<8x128xbf16>
    %cst = arith.constant dense<0.000000e+00> : vector<256x128xf32>
    %2 = tpu.matmul %0, %1, %cst {dimension_numbers = #tpu.dot_dimension_numbers<[1], [0], [0], [1], [0, 0, 1, 1], [], []>} : vector<256x8xbf16>, vector<8x128xbf16>, vector<256x128xf32> -> vector<256x128xf32>
    %c0_3 = arith.constant 0 : index
    %c0_4 = arith.constant 0 : index
    %3 = vector.load %arg3[%c0_3, %c0_4] : memref<1x128xf32, #tpu.memory_space<vmem>>, vector<1x128xf32>
    %4 = vector.broadcast %3 : vector<1x128xf32> to vector<256x128xf32>
    %5 = arith.addf %2, %4 : vector<256x128xf32>
    %cst_5 = arith.constant 0.000000e+00 : f32
    %6 = vector.broadcast %cst_5 : f32 to vector<256x128xf32>
    %7 = arith.maximumf %5, %6 : vector<256x128xf32>
    %8 = arith.truncf %7 : vector<256x128xf32> to vector<256x128xbf16>
    %c0_6 = arith.constant 0 : index
    %c0_7 = arith.constant 0 : index
    %9 = vector.load %arg4[%c0_6, %c0_7] : memref<128x256xbf16, #tpu.memory_space<vmem>>, vector<128x256xbf16>
    %cst_8 = arith.constant dense<0.000000e+00> : vector<256x256xf32>
    %10 = tpu.matmul %8, %9, %cst_8 {dimension_numbers = #tpu.dot_dimension_numbers<[1], [0], [0], [1], [0, 0, 1, 1], [], []>} : vector<256x128xbf16>, vector<128x256xbf16>, vector<256x256xf32> -> vector<256x256xf32>
    %c0_9 = arith.constant 0 : index
    %c0_10 = arith.constant 0 : index
    %11 = vector.load %arg5[%c0_9, %c0_10] : memref<1x256xf32, #tpu.memory_space<vmem>>, vector<1x256xf32>
    %12 = vector.broadcast %11 : vector<1x256xf32> to vector<256x256xf32>
    %13 = arith.addf %10, %12 : vector<256x256xf32>
    %cst_11 = arith.constant 0.000000e+00 : f32
    %14 = vector.broadcast %cst_11 : f32 to vector<256x256xf32>
    %15 = arith.maximumf %13, %14 : vector<256x256xf32>
    %16 = arith.truncf %15 : vector<256x256xf32> to vector<256x256xbf16>
    %c0_12 = arith.constant 0 : index
    %c0_13 = arith.constant 0 : index
    %17 = vector.load %arg6[%c0_12, %c0_13] : memref<256x256xbf16, #tpu.memory_space<vmem>>, vector<256x256xbf16>
    tpu.vector_store %arg6[%c0_12, %c0_13], %16 {strides = array<i32>} : memref<256x256xbf16, #tpu.memory_space<vmem>>, vector<256x256xbf16>,
    return
  }
  func.func @transform_0(%arg0: i32) -> (i32, i32) {
    %c0_i32 = arith.constant 0 : i32
    %c0_i32_0 = arith.constant 0 : i32
    return %arg0, %c0_i32 : i32, i32
  }
  func.func @transform_1(%arg0: i32) -> (i32, i32) {
    %c0_i32 = arith.constant 0 : i32
    %c0_i32_0 = arith.constant 0 : i32
    %c0_i32_1 = arith.constant 0 : i32
    return %c0_i32, %c0_i32_0 : i32, i32
  }
  func.func @transform_2(%arg0: i32) -> (i32, i32) {
    %c0_i32 = arith.constant 0 : i32
    %c0_i32_0 = arith.constant 0 : i32
    %c0_i32_1 = arith.constant 0 : i32
    return %c0_i32, %c0_i32_0 : i32, i32
  }
  func.func @transform_3(%arg0: i32) -> (i32, i32) {
    %c0_i32 = arith.constant 0 : i32
    %c0_i32_0 = arith.constant 0 : i32
    %c0_i32_1 = arith.constant 0 : i32
    return %c0_i32, %c0_i32_0 : i32, i32
  }
  func.func @transform_4(%arg0: i32) -> (i32, i32) {
    %c0_i32 = arith.constant 0 : i32
    %c0_i32_0 = arith.constant 0 : i32
    %c0_i32_1 = arith.constant 0 : i32
    return %c0_i32, %c0_i32_0 : i32, i32
  }
  func.func @transform_5(%arg0: i32) -> (i32, i32) {
    %c0_i32 = arith.constant 0 : i32
    %c0_i32_0 = arith.constant 0 : i32
    return %arg0, %c0_i32 : i32, i32
  }
}

</mosaic_0001>

<llo_original>
// kernel: tpu_custom_call.1
$region0: #{tpu_custom_call.1}
  #allocation0 [shape = 'u32[]', space=smem, size = 0x4, offset = 0x4, fixed_abs, tag = 'smem constant byte address 0x4 - core index']
  #allocation1 [shape = 'u32[144,128]{1,0:T(1,128)}', space=vmem, size = 0x12000, scoped, tag = 'internal scratch']
  %s0 = inlined_call_operand.hbm [shape: bf16[256,8], index: 0, kind: input, shape index: {}]
  %s1 = inlined_call_operand.hbm [shape: bf16[8,128], index: 1, kind: input, shape index: {}]
  %s2 = inlined_call_operand.hbm [shape: f32[1,128], index: 2, kind: input, shape index: {}]
  %s3 = inlined_call_operand.hbm [shape: bf16[128,256], index: 3, kind: input, shape index: {}]
  %s4 = inlined_call_operand.hbm [shape: f32[1,256], index: 4, kind: input, shape index: {}]
  %s5 = inlined_call_operand.hbm [shape: bf16[256,256], index: 5, kind: output, shape index: {}]
  %s6 = sld [smem:[#allocation0]]
  $region50: #{tpu_custom_call.1} parent=0
    _
  %s8 = ssub.s32 1, %s6
  %s9 = scalar_select 0, %s8, %s6
  $region1: #{tpu_custom_call.1} parent=0
    #allocation2 [shape = 'u8[65536]{0}', space=vmem, size = 0x10000, scoped, tag = 'input window, operand 0, single buffered']
    #allocation3 [shape = 's32[1]{0}', space=sflag, size = 0x4, scoped, tag = 'scoped memory for tpu_custom_call.1']
    #allocation4 [shape = 's32[1]{0}', space=sflag, size = 0x4, scoped, tag = 'scoped memory for tpu_custom_call.1']
    #allocation5 [shape = 'u8[2048]{0}', space=vmem, size = 0x800, scoped, tag = 'input window, operand 1, single buffered']
    #allocation6 [shape = 's32[1]{0}', space=sflag, size = 0x4, scoped, tag = 'scoped memory for tpu_custom_call.1']
    #allocation7 [shape = 'u8[512]{0}', space=vmem, size = 0x400, scoped, tag = 'input window, operand 2, single buffered']
    #allocation8 [shape = 'u8[65536]{0}', space=vmem, size = 0x10000, scoped, tag = 'input window, operand 3, single buffered']
    #allocation9 [shape = 's32[1]{0}', space=sflag, size = 0x4, scoped, tag = 'scoped memory for tpu_custom_call.1']
    #allocation10 [shape = 'u8[1024]{0}', space=vmem, size = 0x400, scoped, tag = 'input window, operand 4, single buffered']
    #allocation11 [shape = 'u8[131072]{0}', space=vmem, size = 0x20000, scoped, tag = 'output window, operand 0, single buffered']
    %10 = vsyncpa [#allocation3], 0
    %11 = vsyncpa [#allocation6], 0
    %12 = vsyncpa [#allocation9], 0
    %13 = vsyncpa [#allocation4], 0
    // Predicated region
    $region2: #{tpu_custom_call.1} parent=1 // pred_check
      _
    $region3: #{tpu_custom_call.1} parent=1 // pred_check_branch
      %15 = sbr.rel (0) target = $region5
    $region4: #{tpu_custom_call.1} parent=1 // pred_region
      %s17 = ssub.s32 2048, 2048
      %18 = vsyncadd [#allocation3], %s17
      %s19 = sshll.u32 [#allocation2], 4
      %s20 = int_to_ptr.vmem [resolvable:$true] %s19
      %25 = dma.hbm_to_vmem [thread:$0]  %s0, 2048, %s20, [#allocation3], 64, 64, 4
    $region5: #{tpu_custom_call.1} parent=1 // pred_fallthru
      _
    // Predicated region
    $region6: #{tpu_custom_call.1} parent=1 // pred_check
      _
    $region7: #{tpu_custom_call.1} parent=1 // pred_check_branch
      %27 = sbr.rel (0) target = $region9
    $region8: #{tpu_custom_call.1} parent=1 // pred_region
      %s29 = ssub.s32 64, 64
      %30 = vsyncadd [#allocation6], %s29
      %s32 = sshll.u32 [#allocation5], 4
      %s33 = int_to_ptr.vmem [resolvable:$true] %s32
      %35 = dma.hbm_to_vmem [thread:$0]  %s1, 64, %s33, [#allocation6]
    $region9: #{tpu_custom_call.1} parent=1 // pred_fallthru
      _
    // Predicated region
    $region10: #{tpu_custom_call.1} parent=1 // pred_check
      _
    $region11: #{tpu_custom_call.1} parent=1 // pred_check_branch
      %37 = sbr.rel (0) target = $region13
    $region12: #{tpu_custom_call.1} parent=1 // pred_region
      %s39 = ssub.s32 16, 16
      %40 = vsyncadd [#allocation6], %s39
      %s42 = sshll.u32 [#allocation7], 4
      %s43 = int_to_ptr.vmem [resolvable:$true] %s42
      %45 = dma.hbm_to_vmem [thread:$0]  %s2, 16, %s43, [#allocation6]
    $region13: #{tpu_custom_call.1} parent=1 // pred_fallthru
      _
    // Predicated region
    $region14: #{tpu_custom_call.1} parent=1 // pred_check
      _
    $region15: #{tpu_custom_call.1} parent=1 // pred_check_branch
      %47 = sbr.rel (0) target = $region17
    $region16: #{tpu_custom_call.1} parent=1 // pred_region
      %s49 = ssub.s32 2048, 2048
      %50 = vsyncadd [#allocation9], %s49
      %s51 = sshll.u32 [#allocation8], 4
      %s52 = int_to_ptr.vmem [resolvable:$true] %s51
      %57 = dma.hbm_to_vmem [thread:$0]  %s3, 2048, %s52, [#allocation9], 128, 128, 8
    $region17: #{tpu_custom_call.1} parent=1 // pred_fallthru
      _
    // Predicated region
    $region18: #{tpu_custom_call.1} parent=1 // pred_check
      _
    $region19: #{tpu_custom_call.1} parent=1 // pred_check_branch
      %59 = sbr.rel (0) target = $region21
    $region20: #{tpu_custom_call.1} parent=1 // pred_region
      %s61 = ssub.s32 32, 32
      %62 = vsyncadd [#allocation9], %s61
      %s64 = sshll.u32 [#allocation10], 4
      %s65 = int_to_ptr.vmem [resolvable:$true] %s64
      %67 = dma.hbm_to_vmem [thread:$0]  %s4, 32, %s65, [#allocation9]
    $region21: #{tpu_custom_call.1} parent=1 // pred_fallthru
      _
    // Predicated region
    $region22: #{tpu_custom_call.1} parent=1 // pred_check
      _
    $region23: #{tpu_custom_call.1} parent=1 // pred_check_branch
      %69 = sbr.rel (0) target = $region25
    $region24: #{tpu_custom_call.1} parent=1 // pred_region
      %70 = dma.done [#allocation3], 2048
    $region25: #{tpu_custom_call.1} parent=1 // pred_fallthru
      _
    // Predicated region
    $region26: #{tpu_custom_call.1} parent=1 // pred_check
      _
    $region27: #{tpu_custom_call.1} parent=1 // pred_check_branch
      %72 = sbr.rel (0) target = $region29
    $region28: #{tpu_custom_call.1} parent=1 // pred_region
      %73 = dma.done [#allocation6], 64
    $region29: #{tpu_custom_call.1} parent=1 // pred_fallthru
      _
    // Predicated region
    $region30: #{tpu_custom_call.1} parent=1 // pred_check
      _
    $region31: #{tpu_custom_call.1} parent=1 // pred_check_branch
      %75 = sbr.rel (0) target = $region33
    $region32: #{tpu_custom_call.1} parent=1 // pred_region
      %76 = dma.done [#allocation6], 16
    $region33: #{tpu_custom_call.1} parent=1 // pred_fallthru
      _
    // Predicated region
    $region34: #{tpu_custom_call.1} parent=1 // pred_check
      _
    $region35: #{tpu_custom_call.1} parent=1 // pred_check_branch
      %78 = sbr.rel (0) target = $region37
    $region36: #{tpu_custom_call.1} parent=1 // pred_region
      %79 = dma.done [#allocation9], 2048
    $region37: #{tpu_custom_call.1} parent=1 // pred_fallthru
      _
    // Predicated region
    $region38: #{tpu_custom_call.1} parent=1 // pred_check
      _
    $region39: #{tpu_custom_call.1} parent=1 // pred_check_branch
      %81 = sbr.rel (0) target = $region41
    $region40: #{tpu_custom_call.1} parent=1 // pred_region
      %82 = dma.done [#allocation9], 32
    $region41: #{tpu_custom_call.1} parent=1 // pred_fallthru
      _
    %v84 = vld [vmem:[#allocation2] sm:$0xf]
    %v85 = vld [vmem:[#allocation2 + $0x4] sm:$0xf]
    %v86 = vld [vmem:[#allocation2 + $0x8] sm:$0xf]
    %v87 = vld [vmem:[#allocation2 + $0xc] sm:$0xf]
    %v88 = vld [vmem:[#allocation2 + $0x10] sm:$0xf]
    %v89 = vld [vmem:[#allocation2 + $0x14] sm:$0xf]
    %v90 = vld [vmem:[#allocation2 + $0x18] sm:$0xf]
    %v91 = vld [vmem:[#allocation2 + $0x1c] sm:$0xf]
    %v92 = vld [vmem:[#allocation2 + $0x20] sm:$0xf]
    %v93 = vld [vmem:[#allocation2 + $0x24] sm:$0xf]
    %v94 = vld [vmem:[#allocation2 + $0x28] sm:$0xf]
    %v95 = vld [vmem:[#allocation2 + $0x2c] sm:$0xf]
    %v96 = vld [vmem:[#allocation2 + $0x30] sm:$0xf]
    %v97 = vld [vmem:[#allocation2 + $0x34] sm:$0xf]
    %v98 = vld [vmem:[#allocation2 + $0x38] sm:$0xf]
    %v99 = vld [vmem:[#allocation2 + $0x3c] sm:$0xf]
    %v100 = vld [vmem:[#allocation2 + $0x40] sm:$0xf]
    %v101 = vld [vmem:[#allocation2 + $0x44] sm:$0xf]
    %v102 = vld [vmem:[#allocation2 + $0x48] sm:$0xf]
    %v103 = vld [vmem:[#allocation2 + $0x4c] sm:$0xf]
    %v104 = vld [vmem:[#allocation2 + $0x50] sm:$0xf]
    %v105 = vld [vmem:[#allocation2 + $0x54] sm:$0xf]
    %v106 = vld [vmem:[#allocation2 + $0x58] sm:$0xf]
    %v107 = vld [vmem:[#allocation2 + $0x5c] sm:$0xf]
    %v108 = vld [vmem:[#allocation2 + $0x60] sm:$0xf]
    %v109 = vld [vmem:[#allocation2 + $0x64] sm:$0xf]
    %v110 = vld [vmem:[#allocation2 + $0x68] sm:$0xf]
    %v111 = vld [vmem:[#allocation2 + $0x6c] sm:$0xf]
    %v112 = vld [vmem:[#allocation2 + $0x70] sm:$0xf]
    %v113 = vld [vmem:[#allocation2 + $0x74] sm:$0xf]
    %v114 = vld [vmem:[#allocation2 + $0x78] sm:$0xf]
    %v115 = vld [vmem:[#allocation2 + $0x7c] sm:$0xf]
    %v116 = vld [vmem:[#allocation5] sm:$0xf]
    %v117 = vld [vmem:[#allocation7] sm:$0x1]
    %v119 = vlaneseq
    %v120 = vshrl.u32 %v119, 7
    %v121 = vsub.s32 0, %v120
    %v122 = vrot.slane %v117, %v121
    %v156 = vunpack.c.l.b16 %v84
    %v157 = vunpack.c.l.b16 %v85
    %v158 = vunpack.c.l.b16 %v86
    %v159 = vunpack.c.l.b16 %v87
    %v160 = vunpack.c.l.b16 %v88
    %v161 = vunpack.c.l.b16 %v89
    %v162 = vunpack.c.l.b16 %v90
    %v163 = vunpack.c.l.b16 %v91
    %v164 = vunpack.c.l.b16 %v92
    %v165 = vunpack.c.l.b16 %v93
    %v166 = vunpack.c.l.b16 %v94
    %v167 = vunpack.c.l.b16 %v95
    %v168 = vunpack.c.l.b16 %v96
    %v169 = vunpack.c.l.b16 %v97
    %v170 = vunpack.c.l.b16 %v98
    %v171 = vunpack.c.l.b16 %v99
    %v172 = vunpack.c.l.b16 %v100
    %v173 = vunpack.c.l.b16 %v101
    %v174 = vunpack.c.l.b16 %v102
    %v175 = vunpack.c.l.b16 %v103
    %v176 = vunpack.c.l.b16 %v104
    %v177 = vunpack.c.l.b16 %v105
    %v178 = vunpack.c.l.b16 %v106
    %v179 = vunpack.c.l.b16 %v107
    %v180 = vunpack.c.l.b16 %v108
    %v181 = vunpack.c.l.b16 %v109
    %v182 = vunpack.c.l.b16 %v110
    %v183 = vunpack.c.l.b16 %v111
    %v184 = vunpack.c.l.b16 %v112
    %v185 = vunpack.c.l.b16 %v113
    %v186 = vunpack.c.l.b16 %v114
    %v187 = vunpack.c.l.b16 %v115
    %v188 = vpack.c.b16 %v157, %v156
    %v189 = vpack.c.b16 %v159, %v158
    %v190 = vpack.c.b16 %v161, %v160
    %v191 = vpack.c.b16 %v163, %v162
    %v192 = vpack.c.b16 %v165, %v164
    %v193 = vpack.c.b16 %v167, %v166
    %v194 = vpack.c.b16 %v169, %v168
    %v195 = vpack.c.b16 %v171, %v170
    %v196 = vpack.c.b16 %v173, %v172
    %v197 = vpack.c.b16 %v175, %v174
    %v198 = vpack.c.b16 %v177, %v176
    %v199 = vpack.c.b16 %v179, %v178
    %v200 = vpack.c.b16 %v181, %v180
    %v201 = vpack.c.b16 %v183, %v182
    %v202 = vpack.c.b16 %v185, %v184
    %v203 = vpack.c.b16 %v187, %v186
    %vm204 = vcmask 64512
    %v206 = vsel %vm204, %v188, 0
    %v209 = vsel %vm204, %v189, 0
    %v212 = vsel %vm204, %v190, 0
    %v215 = vsel %vm204, %v191, 0
    %v218 = vsel %vm204, %v192, 0
    %v221 = vsel %vm204, %v193, 0
    %v224 = vsel %vm204, %v194, 0
    %v227 = vsel %vm204, %v195, 0
    %v230 = vsel %vm204, %v196, 0
    %v233 = vsel %vm204, %v197, 0
    %v236 = vsel %vm204, %v198, 0
    %v239 = vsel %vm204, %v199, 0
    %v242 = vsel %vm204, %v200, 0
    %v245 = vsel %vm204, %v201, 0
    %v248 = vsel %vm204, %v202, 0
    %v251 = vsel %vm204, %v203, 0
    %vm253 = vcmask 1043456
    %v255 = vsel %vm253, %v116, 0
    %257 = vmatprep.subr.bf16.mxu0 0
    %258 = vmatpush1.bf16.msra.mxu0 %v255
    %259 = vmatprep.subr.bf16.mxu0 0
    %260 = vmatpush1.bf16.msra.mxu0 0
    %261 = vmatprep.subr.bf16.mxu0 0
    %262 = vmatpush1.bf16.msra.mxu0 0
    %263 = vmatprep.subr.bf16.mxu0 0
    %264 = vmatpush1.bf16.msra.mxu0 0
    %265 = vmatprep.subr.bf16.mxu0 0
    %266 = vmatpush1.bf16.msra.mxu0 0
    %267 = vmatprep.subr.bf16.mxu0 0
    %268 = vmatpush1.bf16.msra.mxu0 0
    %269 = vmatprep.subr.bf16.mxu0 0
    %270 = vmatpush1.bf16.msra.mxu0 0
    %271 = vmatprep.subr.bf16.mxu0 0
    %272 = vmatpush1.bf16.msra.mxu0 0
    %273 = vmatprep.subr.bf16.mxu0 0
    %274 = vmatpush1.bf16.msra.mxu0 0
    %275 = vmatprep.subr.bf16.mxu0 0
    %276 = vmatpush1.bf16.msra.mxu0 0
    %277 = vmatprep.subr.bf16.mxu0 0
    %278 = vmatpush1.bf16.msra.mxu0 0
    %279 = vmatprep.subr.bf16.mxu0 0
    %280 = vmatpush1.bf16.msra.mxu0 0
    %281 = vmatprep.subr.bf16.mxu0 0
    %282 = vmatpush1.bf16.msra.mxu0 0
    %283 = vmatprep.subr.bf16.mxu0 0
    %284 = vmatpush1.bf16.msra.mxu0 0
    %285 = vmatprep.subr.bf16.mxu0 0
    %286 = vmatpush1.bf16.msra.mxu0 0
    %287 = vmatprep.subr.bf16.mxu0 0
    %288 = vmatpush1.bf16.msra.mxu0 0
    %289 = vmatprep.mubr.bf16.mxu0 0
    %290 = vmatmul.mubr.bf16.gmra.mrb[0].mxu0 %v206
    %v291 = vpop.f32.mrb[0].mxu0
    %v292 = vadd.f32 %v122, %v291
    %v293 = vpop.f32.mrb[0].mxu0
    %v294 = vpop.f32.mrb[0].mxu0
    %v295 = vadd.f32 %v122, %v294
    %v296 = vpop.f32.mrb[0].mxu0
    %297 = vmatprep.mubr.bf16.mxu0 0
    %298 = vmatmul.mubr.bf16.gmra.mrb[0].mxu0 %v209
    %v299 = vpop.f32.mrb[0].mxu0
    %v300 = vadd.f32 %v122, %v299
    %v301 = vpop.f32.mrb[0].mxu0
    %v302 = vpop.f32.mrb[0].mxu0
    %v303 = vadd.f32 %v122, %v302
    %v304 = vpop.f32.mrb[0].mxu0
    %305 = vmatprep.mubr.bf16.mxu0 0
    %306 = vmatmul.mubr.bf16.gmra.mrb[0].mxu0 %v212
    %v307 = vpop.f32.mrb[0].mxu0
    %v308 = vadd.f32 %v122, %v307
    %v309 = vpop.f32.mrb[0].mxu0
    %v310 = vpop.f32.mrb[0].mxu0
    %v311 = vadd.f32 %v122, %v310
    %v312 = vpop.f32.mrb[0].mxu0
    %313 = vmatprep.mubr.bf16.mxu0 0
    %314 = vmatmul.mubr.bf16.gmra.mrb[0].mxu0 %v215
    %v315 = vpop.f32.mrb[0].mxu0
    %v316 = vadd.f32 %v122, %v315
    %v317 = vpop.f32.mrb[0].mxu0
    %v318 = vpop.f32.mrb[0].mxu0
    %v319 = vadd.f32 %v122, %v318
    %v320 = vpop.f32.mrb[0].mxu0
    %321 = vmatprep.mubr.bf16.mxu0 0
    %322 = vmatmul.mubr.bf16.gmra.mrb[0].mxu0 %v218
    %v323 = vpop.f32.mrb[0].mxu0
    %v324 = vadd.f32 %v122, %v323
    %v325 = vpop.f32.mrb[0].mxu0
    %v326 = vpop.f32.mrb[0].mxu0
    %v327 = vadd.f32 %v122, %v326
    %v328 = vpop.f32.mrb[0].mxu0
    %329 = vmatprep.mubr.bf16.mxu0 0
    %330 = vmatmul.mubr.bf16.gmra.mrb[0].mxu0 %v221
    %v331 = vpop.f32.mrb[0].mxu0
    %v332 = vadd.f32 %v122, %v331
    %v333 = vpop.f32.mrb[0].mxu0
    %v334 = vpop.f32.mrb[0].mxu0
    %v335 = vadd.f32 %v122, %v334
    %v336 = vpop.f32.mrb[0].mxu0
    %337 = vmatprep.mubr.bf16.mxu0 0
    %338 = vmatmul.mubr.bf16.gmra.mrb[0].mxu0 %v224
    %v339 = vpop.f32.mrb[0].mxu0
    %v340 = vadd.f32 %v122, %v339
    %v341 = vpop.f32.mrb[0].mxu0
    %v342 = vpop.f32.mrb[0].mxu0
    %v343 = vadd.f32 %v122, %v342
    %v344 = vpop.f32.mrb[0].mxu0
    %345 = vmatprep.mubr.bf16.mxu0 0
    %346 = vmatmul.mubr.bf16.gmra.mrb[0].mxu0 %v227
    %v347 = vpop.f32.mrb[0].mxu0
    %v348 = vadd.f32 %v122, %v347
    %v349 = vpop.f32.mrb[0].mxu0
    %v350 = vpop.f32.mrb[0].mxu0
    %v351 = vadd.f32 %v122, %v350
    %v352 = vpop.f32.mrb[0].mxu0
    %353 = vmatprep.mubr.bf16.mxu0 0
    %354 = vmatmul.mubr.bf16.gmra.mrb[0].mxu0 %v230
    %v355 = vpop.f32.mrb[0].mxu0
    %v356 = vadd.f32 %v122, %v355
    %v357 = vpop.f32.mrb[0].mxu0
    %v358 = vpop.f32.mrb[0].mxu0
    %v359 = vadd.f32 %v122, %v358
    %v360 = vpop.f32.mrb[0].mxu0
    %361 = vmatprep.mubr.bf16.mxu0 0
    %362 = vmatmul.mubr.bf16.gmra.mrb[0].mxu0 %v233
    %v363 = vpop.f32.mrb[0].mxu0
    %v364 = vadd.f32 %v122, %v363
    %v365 = vpop.f32.mrb[0].mxu0
    %v366 = vpop.f32.mrb[0].mxu0
    %v367 = vadd.f32 %v122, %v366
    %v368 = vpop.f32.mrb[0].mxu0
    %369 = vmatprep.mubr.bf16.mxu0 0
    %370 = vmatmul.mubr.bf16.gmra.mrb[0].mxu0 %v236
    %v371 = vpop.f32.mrb[0].mxu0
    %v372 = vadd.f32 %v122, %v371
    %v373 = vpop.f32.mrb[0].mxu0
    %v374 = vpop.f32.mrb[0].mxu0
    %v375 = vadd.f32 %v122, %v374
    %v376 = vpop.f32.mrb[0].mxu0
    %377 = vmatprep.mubr.bf16.mxu0 0
    %378 = vmatmul.mubr.bf16.gmra.mrb[0].mxu0 %v239
    %v379 = vpop.f32.mrb[0].mxu0
    %v380 = vadd.f32 %v122, %v379
    %v381 = vpop.f32.mrb[0].mxu0
    %v382 = vpop.f32.mrb[0].mxu0
    %v383 = vadd.f32 %v122, %v382
    %v384 = vpop.f32.mrb[0].mxu0
    %385 = vmatprep.mubr.bf16.mxu0 0
    %386 = vmatmul.mubr.bf16.gmra.mrb[0].mxu0 %v242
    %v387 = vpop.f32.mrb[0].mxu0
    %v388 = vadd.f32 %v122, %v387
    %v389 = vpop.f32.mrb[0].mxu0
    %v390 = vpop.f32.mrb[0].mxu0
    %v391 = vadd.f32 %v122, %v390
    %v392 = vpop.f32.mrb[0].mxu0
    %393 = vmatprep.mubr.bf16.mxu0 0
    %394 = vmatmul.mubr.bf16.gmra.mrb[0].mxu0 %v245
    %v395 = vpop.f32.mrb[0].mxu0
    %v396 = vadd.f32 %v122, %v395
    %v397 = vpop.f32.mrb[0].mxu0
    %v398 = vpop.f32.mrb[0].mxu0
    %v399 = vadd.f32 %v122, %v398
    %v400 = vpop.f32.mrb[0].mxu0
    %401 = vmatprep.mubr.bf16.mxu0 0
    %402 = vmatmul.mubr.bf16.gmra.mrb[0].mxu0 %v248
    %v403 = vpop.f32.mrb[0].mxu0
    %v404 = vadd.f32 %v122, %v403
    %v405 = vpop.f32.mrb[0].mxu0
    %v406 = vpop.f32.mrb[0].mxu0
    %v407 = vadd.f32 %v122, %v406
    %v408 = vpop.f32.mrb[0].mxu0
    %409 = vmatprep.mubr.bf16.mxu0 0
    %410 = vmatmul.mubr.bf16.gmra.mrb[0].mxu0 %v251
    %v411 = vpop.f32.mrb[0].mxu0
    %v412 = vadd.f32 %v122, %v411
    %v413 = vpop.f32.mrb[0].mxu0
    %v414 = vpop.f32.mrb[0].mxu0
    %v415 = vadd.f32 %v122, %v414
    %v416 = vpop.f32.mrb[0].mxu0
    %417 = vdwg.mxu0
    %v418 = vmax.f32 %v292, 0.0
    %v419 = vmax.f32 %v295, 0.0
    %v420 = vmax.f32 %v300, 0.0
    %v421 = vmax.f32 %v303, 0.0
    %v422 = vmax.f32 %v308, 0.0
    %v423 = vmax.f32 %v311, 0.0
    %v424 = vmax.f32 %v316, 0.0
    %v425 = vmax.f32 %v319, 0.0
    %v426 = vmax.f32 %v324, 0.0
    %v427 = vmax.f32 %v327, 0.0
    %v428 = vmax.f32 %v332, 0.0
    %v429 = vmax.f32 %v335, 0.0
    %v430 = vmax.f32 %v340, 0.0
    %v431 = vmax.f32 %v343, 0.0
    %v432 = vmax.f32 %v348, 0.0
    %v433 = vmax.f32 %v351, 0.0
    %v434 = vmax.f32 %v356, 0.0
    %v435 = vmax.f32 %v359, 0.0
    %v436 = vmax.f32 %v364, 0.0
    %v437 = vmax.f32 %v367, 0.0
    %v438 = vmax.f32 %v372, 0.0
    %v439 = vmax.f32 %v375, 0.0
    %v440 = vmax.f32 %v380, 0.0
    %v441 = vmax.f32 %v383, 0.0
    %v442 = vmax.f32 %v388, 0.0
    %v443 = vmax.f32 %v391, 0.0
    %v444 = vmax.f32 %v396, 0.0
    %v445 = vmax.f32 %v399, 0.0
    %v446 = vmax.f32 %v404, 0.0
    %v447 = vmax.f32 %v407, 0.0
    %v448 = vmax.f32 %v412, 0.0
    %v449 = vmax.f32 %v415, 0.0
    %v450 = vpack.c.bf16 %v419, %v418
    %v451 = vpack.c.bf16 %v421, %v420
    %v452 = vpack.c.bf16 %v423, %v422
    %v453 = vpack.c.bf16 %v425, %v424
    %v454 = vpack.c.bf16 %v427, %v426
    %v455 = vpack.c.bf16 %v429, %v428
    %v456 = vpack.c.bf16 %v431, %v430
    %v457 = vpack.c.bf16 %v433, %v432
    %v458 = vpack.c.bf16 %v435, %v434
    %v459 = vpack.c.bf16 %v437, %v436
    %v460 = vpack.c.bf16 %v439, %v438
    %v461 = vpack.c.bf16 %v441, %v440
    %v462 = vpack.c.bf16 %v443, %v442
    %v463 = vpack.c.bf16 %v445, %v444
    %v464 = vpack.c.bf16 %v447, %v446
    %v465 = vpack.c.bf16 %v449, %v448
    %v466 = vld [vmem:[#allocation8] sm:$0xff]
    %v467 = vld [vmem:[#allocation8 + $0x8] sm:$0xff]
    %v468 = vld [vmem:[#allocation8 + $0x10] sm:$0xff]
    %v469 = vld [vmem:[#allocation8 + $0x18] sm:$0xff]
    %v470 = vld [vmem:[#allocation8 + $0x20] sm:$0xff]
    %v471 = vld [vmem:[#allocation8 + $0x28] sm:$0xff]
    %v472 = vld [vmem:[#allocation8 + $0x30] sm:$0xff]
    %v473 = vld [vmem:[#allocation8 + $0x38] sm:$0xff]
    %v474 = vld [vmem:[#allocation8 + $0x40] sm:$0xff]
    %v475 = vld [vmem:[#allocation8 + $0x48] sm:$0xff]
    %v476 = vld [vmem:[#allocation8 + $0x50] sm:$0xff]
    %v477 = vld [vmem:[#allocation8 + $0x58] sm:$0xff]
    %v478 = vld [vmem:[#allocation8 + $0x60] sm:$0xff]
    %v479 = vld [vmem:[#allocation8 + $0x68] sm:$0xff]
    %v480 = vld [vmem:[#allocation8 + $0x70] sm:$0xff]
    %v481 = vld [vmem:[#allocation8 + $0x78] sm:$0xff]
    %v482 = vld [vmem:[#allocation10] sm:$0x3]
    %v484 = vlaneseq
    %v485 = vshrl.u32 %v484, 7
    %v486 = vsub.s32 0, %v485
    %v487 = vrot.slane %v482, %v486
    %v488 = vlaneseq
    %v489 = vshrl.u32 %v488, 7
    %v490 = vsub.s32 1, %v489
    %v491 = vrot.slane %v482, %v490
    %v510 = vunpack.c.l.b16 %v466
    %v511 = vunpack.c.h.b16 %v466
    %v512 = vunpack.c.l.b16 %v467
    %v513 = vunpack.c.h.b16 %v467
    %v514 = vunpack.c.l.b16 %v468
    %v515 = vunpack.c.h.b16 %v468
    %v516 = vunpack.c.l.b16 %v469
    %v517 = vunpack.c.h.b16 %v469
    %v518 = vunpack.c.l.b16 %v470
    %v519 = vunpack.c.h.b16 %v470
    %v520 = vunpack.c.l.b16 %v471
    %v521 = vunpack.c.h.b16 %v471
    %v522 = vunpack.c.l.b16 %v472
    %v523 = vunpack.c.h.b16 %v472
    %v524 = vunpack.c.l.b16 %v473
    %v525 = vunpack.c.h.b16 %v473
    %v526 = vunpack.c.l.b16 %v474
    %v527 = vunpack.c.h.b16 %v474
    %v528 = vunpack.c.l.b16 %v475
    %v529 = vunpack.c.h.b16 %v475
    %v530 = vunpack.c.l.b16 %v476
    %v531 = vunpack.c.h.b16 %v476
    %v532 = vunpack.c.l.b16 %v477
    %v533 = vunpack.c.h.b16 %v477
    %v534 = vunpack.c.l.b16 %v478
    %v535 = vunpack.c.h.b16 %v478
    %v536 = vunpack.c.l.b16 %v479
    %v537 = vunpack.c.h.b16 %v479
    %v538 = vunpack.c.l.b16 %v480
    %v539 = vunpack.c.h.b16 %v480
    %v540 = vunpack.c.l.b16 %v481
    %v541 = vunpack.c.h.b16 %v481
    %v542 = vpack.c.b16 %v512, %v510
    %v543 = vpack.c.b16 %v513, %v511
    %v544 = vpack.c.b16 %v516, %v514
    %v545 = vpack.c.b16 %v517, %v515
    %v546 = vpack.c.b16 %v520, %v518
    %v547 = vpack.c.b16 %v521, %v519
    %v548 = vpack.c.b16 %v524, %v522
    %v549 = vpack.c.b16 %v525, %v523
    %v550 = vpack.c.b16 %v528, %v526
    %v551 = vpack.c.b16 %v529, %v527
    %v552 = vpack.c.b16 %v532, %v530
    %v553 = vpack.c.b16 %v533, %v531
    %v554 = vpack.c.b16 %v536, %v534
    %v555 = vpack.c.b16 %v537, %v535
    %v556 = vpack.c.b16 %v540, %v538
    %v557 = vpack.c.b16 %v541, %v539
    %574 = vmatprep.subr.bf16.mxu0 %v543
    %575 = vmatpush1.bf16.msra.mxu0 %v542
    %576 = vmatprep.subr.bf16.mxu0 %v545
    %577 = vmatpush1.bf16.msra.mxu0 %v544
    %578 = vmatprep.subr.bf16.mxu0 %v547
    %579 = vmatpush1.bf16.msra.mxu0 %v546
    %580 = vmatprep.subr.bf16.mxu0 %v549
    %581 = vmatpush1.bf16.msra.mxu0 %v548
    %582 = vmatprep.subr.bf16.mxu0 %v551
    %583 = vmatpush1.bf16.msra.mxu0 %v550
    %584 = vmatprep.subr.bf16.mxu0 %v553
    %585 = vmatpush1.bf16.msra.mxu0 %v552
    %586 = vmatprep.subr.bf16.mxu0 %v555
    %587 = vmatpush1.bf16.msra.mxu0 %v554
    %588 = vmatprep.subr.bf16.mxu0 %v557
    %589 = vmatpush1.bf16.msra.mxu0 %v556
    %590 = vmatprep.subr.bf16.mxu0 0
    %591 = vmatpush1.bf16.msra.mxu0 0
    %592 = vmatprep.subr.bf16.mxu0 0
    %593 = vmatpush1.bf16.msra.mxu0 0
    %594 = vmatprep.subr.bf16.mxu0 0
    %595 = vmatpush1.bf16.msra.mxu0 0
    %596 = vmatprep.subr.bf16.mxu0 0
    %597 = vmatpush1.bf16.msra.mxu0 0
    %598 = vmatprep.subr.bf16.mxu0 0
    %599 = vmatpush1.bf16.msra.mxu0 0
    %600 = vmatprep.subr.bf16.mxu0 0
    %601 = vmatpush1.bf16.msra.mxu0 0
    %602 = vmatprep.subr.bf16.mxu0 0
    %603 = vmatpush1.bf16.msra.mxu0 0
    %604 = vmatprep.subr.bf16.mxu0 0
    %605 = vmatpush1.bf16.msra.mxu0 0
    %606 = vmatprep.mubr.bf16.mxu0 0
    %607 = vmatmul.mubr.bf16.gmra.mrb[0].mxu0 %v450
    %v608 = vpop.f32.mrb[0].mxu0
    %v609 = vadd.f32 %v487, %v608
    %v610 = vpop.f32.mrb[0].mxu0
    %v611 = vadd.f32 %v491, %v610
    %v612 = vpop.f32.mrb[0].mxu0
    %v613 = vadd.f32 %v487, %v612
    %v614 = vpop.f32.mrb[0].mxu0
    %v615 = vadd.f32 %v491, %v614
    %616 = vmatprep.mubr.bf16.mxu0 0
    %617 = vmatmul.mubr.bf16.gmra.mrb[0].mxu0 %v451
    %v618 = vpop.f32.mrb[0].mxu0
    %v619 = vadd.f32 %v487, %v618
    %v620 = vpop.f32.mrb[0].mxu0
    %v621 = vadd.f32 %v491, %v620
    %v622 = vpop.f32.mrb[0].mxu0
    %v623 = vadd.f32 %v487, %v622
    %v624 = vpop.f32.mrb[0].mxu0
    %v625 = vadd.f32 %v491, %v624
    %626 = vmatprep.mubr.bf16.mxu0 0
    %627 = vmatmul.mubr.bf16.gmra.mrb[0].mxu0 %v452
    %v628 = vpop.f32.mrb[0].mxu0
    %v629 = vadd.f32 %v487, %v628
    %v630 = vpop.f32.mrb[0].mxu0
    %v631 = vadd.f32 %v491, %v630
    %v632 = vpop.f32.mrb[0].mxu0
    %v633 = vadd.f32 %v487, %v632
    %v634 = vpop.f32.mrb[0].mxu0
    %v635 = vadd.f32 %v491, %v634
    %636 = vmatprep.mubr.bf16.mxu0 0
    %637 = vmatmul.mubr.bf16.gmra.mrb[0].mxu0 %v453
    %v638 = vpop.f32.mrb[0].mxu0
    %v639 = vadd.f32 %v487, %v638
    %v640 = vpop.f32.mrb[0].mxu0
    %v641 = vadd.f32 %v491, %v640
    %v642 = vpop.f32.mrb[0].mxu0
    %v643 = vadd.f32 %v487, %v642
    %v644 = vpop.f32.mrb[0].mxu0
    %v645 = vadd.f32 %v491, %v644
    %646 = vmatprep.mubr.bf16.mxu0 0
    %647 = vmatmul.mubr.bf16.gmra.mrb[0].mxu0 %v454
    %v648 = vpop.f32.mrb[0].mxu0
    %v649 = vadd.f32 %v487, %v648
    %v650 = vpop.f32.mrb[0].mxu0
    %v651 = vadd.f32 %v491, %v650
    %v652 = vpop.f32.mrb[0].mxu0
    %v653 = vadd.f32 %v487, %v652
    %v654 = vpop.f32.mrb[0].mxu0
    %v655 = vadd.f32 %v491, %v654
    %656 = vmatprep.mubr.bf16.mxu0 0
    %657 = vmatmul.mubr.bf16.gmra.mrb[0].mxu0 %v455
    %v658 = vpop.f32.mrb[0].mxu0
    %v659 = vadd.f32 %v487, %v658
    %v660 = vpop.f32.mrb[0].mxu0
    %v661 = vadd.f32 %v491, %v660
    %v662 = vpop.f32.mrb[0].mxu0
    %v663 = vadd.f32 %v487, %v662
    %v664 = vpop.f32.mrb[0].mxu0
    %v665 = vadd.f32 %v491, %v664
    %666 = vmatprep.mubr.bf16.mxu0 0
    %667 = vmatmul.mubr.bf16.gmra.mrb[0].mxu0 %v456
    %v668 = vpop.f32.mrb[0].mxu0
    %v669 = vadd.f32 %v487, %v668
    %v670 = vpop.f32.mrb[0].mxu0
    %v671 = vadd.f32 %v491, %v670
    %v672 = vpop.f32.mrb[0].mxu0
    %v673 = vadd.f32 %v487, %v672
    %v674 = vpop.f32.mrb[0].mxu0
    %v675 = vadd.f32 %v491, %v674
    %676 = vmatprep.mubr.bf16.mxu0 0
    %677 = vmatmul.mubr.bf16.gmra.mrb[0].mxu0 %v457
    %v678 = vpop.f32.mrb[0].mxu0
    %v679 = vadd.f32 %v487, %v678
    %v680 = vpop.f32.mrb[0].mxu0
    %v681 = vadd.f32 %v491, %v680
    %v682 = vpop.f32.mrb[0].mxu0
    %v683 = vadd.f32 %v487, %v682
    %v684 = vpop.f32.mrb[0].mxu0
    %v685 = vadd.f32 %v491, %v684
    %686 = vmatprep.mubr.bf16.mxu0 0
    %687 = vmatmul.mubr.bf16.gmra.mrb[0].mxu0 %v458
    %v688 = vpop.f32.mrb[0].mxu0
    %v689 = vadd.f32 %v487, %v688
    %v690 = vpop.f32.mrb[0].mxu0
    %v691 = vadd.f32 %v491, %v690
    %v692 = vpop.f32.mrb[0].mxu0
    %v693 = vadd.f32 %v487, %v692
    %v694 = vpop.f32.mrb[0].mxu0
    %v695 = vadd.f32 %v491, %v694
    %696 = vmatprep.mubr.bf16.mxu0 0
    %697 = vmatmul.mubr.bf16.gmra.mrb[0].mxu0 %v459
    %v698 = vpop.f32.mrb[0].mxu0
    %v699 = vadd.f32 %v487, %v698
    %v700 = vpop.f32.mrb[0].mxu0
    %v701 = vadd.f32 %v491, %v700
    %v702 = vpop.f32.mrb[0].mxu0
    %v703 = vadd.f32 %v487, %v702
    %v704 = vpop.f32.mrb[0].mxu0
    %v705 = vadd.f32 %v491, %v704
    %706 = vmatprep.mubr.bf16.mxu0 0
    %707 = vmatmul.mubr.bf16.gmra.mrb[0].mxu0 %v460
    %v708 = vpop.f32.mrb[0].mxu0
    %v709 = vadd.f32 %v487, %v708
    %v710 = vpop.f32.mrb[0].mxu0
    %v711 = vadd.f32 %v491, %v710
    %v712 = vpop.f32.mrb[0].mxu0
    %v713 = vadd.f32 %v487, %v712
    %v714 = vpop.f32.mrb[0].mxu0
    %v715 = vadd.f32 %v491, %v714
    %716 = vmatprep.mubr.bf16.mxu0 0
    %717 = vmatmul.mubr.bf16.gmra.mrb[0].mxu0 %v461
    %v718 = vpop.f32.mrb[0].mxu0
    %v719 = vadd.f32 %v487, %v718
    %v720 = vpop.f32.mrb[0].mxu0
    %v721 = vadd.f32 %v491, %v720
    %v722 = vpop.f32.mrb[0].mxu0
    %v723 = vadd.f32 %v487, %v722
    %v724 = vpop.f32.mrb[0].mxu0
    %v725 = vadd.f32 %v491, %v724
    %726 = vmatprep.mubr.bf16.mxu0 0
    %727 = vmatmul.mubr.bf16.gmra.mrb[0].mxu0 %v462
    %v728 = vpop.f32.mrb[0].mxu0
    %v729 = vadd.f32 %v487, %v728
    %v730 = vpop.f32.mrb[0].mxu0
    %v731 = vadd.f32 %v491, %v730
    %v732 = vpop.f32.mrb[0].mxu0
    %v733 = vadd.f32 %v487, %v732
    %v734 = vpop.f32.mrb[0].mxu0
    %v735 = vadd.f32 %v491, %v734
    %736 = vmatprep.mubr.bf16.mxu0 0
    %737 = vmatmul.mubr.bf16.gmra.mrb[0].mxu0 %v463
    %v738 = vpop.f32.mrb[0].mxu0
    %v739 = vadd.f32 %v487, %v738
    %v740 = vpop.f32.mrb[0].mxu0
    %v741 = vadd.f32 %v491, %v740
    %v742 = vpop.f32.mrb[0].mxu0
    %v743 = vadd.f32 %v487, %v742
    %v744 = vpop.f32.mrb[0].mxu0
    %v745 = vadd.f32 %v491, %v744
    %746 = vmatprep.mubr.bf16.mxu0 0
    %747 = vmatmul.mubr.bf16.gmra.mrb[0].mxu0 %v464
    %v748 = vpop.f32.mrb[0].mxu0
    %v749 = vadd.f32 %v487, %v748
    %v750 = vpop.f32.mrb[0].mxu0
    %v751 = vadd.f32 %v491, %v750
    %v752 = vpop.f32.mrb[0].mxu0
    %v753 = vadd.f32 %v487, %v752
    %v754 = vpop.f32.mrb[0].mxu0
    %v755 = vadd.f32 %v491, %v754
    %756 = vmatprep.mubr.bf16.mxu0 0
    %757 = vmatmul.mubr.bf16.gmra.mrb[0].mxu0 %v465
    %v758 = vpop.f32.mrb[0].mxu0
    %v759 = vadd.f32 %v487, %v758
    %v760 = vpop.f32.mrb[0].mxu0
    %v761 = vadd.f32 %v491, %v760
    %v762 = vpop.f32.mrb[0].mxu0
    %v763 = vadd.f32 %v487, %v762
    %v764 = vpop.f32.mrb[0].mxu0
    %v765 = vadd.f32 %v491, %v764
    %766 = vdwg.mxu0
    %v767 = vmax.f32 %v609, 0.0
    %v768 = vmax.f32 %v611, 0.0
    %v769 = vmax.f32 %v613, 0.0
    %v770 = vmax.f32 %v615, 0.0
    %v771 = vmax.f32 %v619, 0.0
    %v772 = vmax.f32 %v621, 0.0
    %v773 = vmax.f32 %v623, 0.0
    %v774 = vmax.f32 %v625, 0.0
    %v775 = vmax.f32 %v629, 0.0
    %v776 = vmax.f32 %v631, 0.0
    %v777 = vmax.f32 %v633, 0.0
    %v778 = vmax.f32 %v635, 0.0
    %v779 = vmax.f32 %v639, 0.0
    %v780 = vmax.f32 %v641, 0.0
    %v781 = vmax.f32 %v643, 0.0
    %v782 = vmax.f32 %v645, 0.0
    %v783 = vmax.f32 %v649, 0.0
    %v784 = vmax.f32 %v651, 0.0
    %v785 = vmax.f32 %v653, 0.0
    %v786 = vmax.f32 %v655, 0.0
    %v787 = vmax.f32 %v659, 0.0
    %v788 = vmax.f32 %v661, 0.0
    %v789 = vmax.f32 %v663, 0.0
    %v790 = vmax.f32 %v665, 0.0
    %v791 = vmax.f32 %v669, 0.0
    %v792 = vmax.f32 %v671, 0.0
    %v793 = vmax.f32 %v673, 0.0
    %v794 = vmax.f32 %v675, 0.0
    %v795 = vmax.f32 %v679, 0.0
    %v796 = vmax.f32 %v681, 0.0
    %v797 = vmax.f32 %v683, 0.0
    %v798 = vmax.f32 %v685, 0.0
    %v799 = vmax.f32 %v689, 0.0
    %v800 = vmax.f32 %v691, 0.0
    %v801 = vmax.f32 %v693, 0.0
    %v802 = vmax.f32 %v695, 0.0
    %v803 = vmax.f32 %v699, 0.0
    %v804 = vmax.f32 %v701, 0.0
    %v805 = vmax.f32 %v703, 0.0
    %v806 = vmax.f32 %v705, 0.0
    %v807 = vmax.f32 %v709, 0.0
    %v808 = vmax.f32 %v711, 0.0
    %v809 = vmax.f32 %v713, 0.0
    %v810 = vmax.f32 %v715, 0.0
    %v811 = vmax.f32 %v719, 0.0
    %v812 = vmax.f32 %v721, 0.0
    %v813 = vmax.f32 %v723, 0.0
    %v814 = vmax.f32 %v725, 0.0
    %v815 = vmax.f32 %v729, 0.0
    %v816 = vmax.f32 %v731, 0.0
    %v817 = vmax.f32 %v733, 0.0
    %v818 = vmax.f32 %v735, 0.0
    %v819 = vmax.f32 %v739, 0.0
    %v820 = vmax.f32 %v741, 0.0
    %v821 = vmax.f32 %v743, 0.0
    %v822 = vmax.f32 %v745, 0.0
    %v823 = vmax.f32 %v749, 0.0
    %v824 = vmax.f32 %v751, 0.0
    %v825 = vmax.f32 %v753, 0.0
    %v826 = vmax.f32 %v755, 0.0
    %v827 = vmax.f32 %v759, 0.0
    %v828 = vmax.f32 %v761, 0.0
    %v829 = vmax.f32 %v763, 0.0
    %v830 = vmax.f32 %v765, 0.0
    %v831 = vpack.c.bf16 %v769, %v767
    %v832 = vpack.c.bf16 %v770, %v768
    %v833 = vpack.c.bf16 %v773, %v771
    %v834 = vpack.c.bf16 %v774, %v772
    %v835 = vpack.c.bf16 %v777, %v775
    %v836 = vpack.c.bf16 %v778, %v776
    %v837 = vpack.c.bf16 %v781, %v779
    %v838 = vpack.c.bf16 %v782, %v780
    %v839 = vpack.c.bf16 %v785, %v783
    %v840 = vpack.c.bf16 %v786, %v784
    %v841 = vpack.c.bf16 %v789, %v787
    %v842 = vpack.c.bf16 %v790, %v788
    %v843 = vpack.c.bf16 %v793, %v791
    %v844 = vpack.c.bf16 %v794, %v792
    %v845 = vpack.c.bf16 %v797, %v795
    %v846 = vpack.c.bf16 %v798, %v796
    %v847 = vpack.c.bf16 %v801, %v799
    %v848 = vpack.c.bf16 %v802, %v800
    %v849 = vpack.c.bf16 %v805, %v803
    %v850 = vpack.c.bf16 %v806, %v804
    %v851 = vpack.c.bf16 %v809, %v807
    %v852 = vpack.c.bf16 %v810, %v808
    %v853 = vpack.c.bf16 %v813, %v811
    %v854 = vpack.c.bf16 %v814, %v812
    %v855 = vpack.c.bf16 %v817, %v815
    %v856 = vpack.c.bf16 %v818, %v816
    %v857 = vpack.c.bf16 %v821, %v819
    %v858 = vpack.c.bf16 %v822, %v820
    %v859 = vpack.c.bf16 %v825, %v823
    %v860 = vpack.c.bf16 %v826, %v824
    %v861 = vpack.c.bf16 %v829, %v827
    %v862 = vpack.c.bf16 %v830, %v828
    %v895 = vunpack.c.l.b16 %v831
    %v896 = vunpack.c.l.b16 %v832
    %v897 = vunpack.c.h.b16 %v831
    %v898 = vunpack.c.h.b16 %v832
    %v899 = vunpack.c.l.b16 %v833
    %v900 = vunpack.c.l.b16 %v834
    %v901 = vunpack.c.h.b16 %v833
    %v902 = vunpack.c.h.b16 %v834
    %v903 = vunpack.c.l.b16 %v835
    %v904 = vunpack.c.l.b16 %v836
    %v905 = vunpack.c.h.b16 %v835
    %v906 = vunpack.c.h.b16 %v836
    %v907 = vunpack.c.l.b16 %v837
    %v908 = vunpack.c.l.b16 %v838
    %v909 = vunpack.c.h.b16 %v837
    %v910 = vunpack.c.h.b16 %v838
    %v911 = vunpack.c.l.b16 %v839
    %v912 = vunpack.c.l.b16 %v840
    %v913 = vunpack.c.h.b16 %v839
    %v914 = vunpack.c.h.b16 %v840
    %v915 = vunpack.c.l.b16 %v841
    %v916 = vunpack.c.l.b16 %v842
    %v917 = vunpack.c.h.b16 %v841
    %v918 = vunpack.c.h.b16 %v842
    %v919 = vunpack.c.l.b16 %v843
    %v920 = vunpack.c.l.b16 %v844
    %v921 = vunpack.c.h.b16 %v843
    %v922 = vunpack.c.h.b16 %v844
    %v923 = vunpack.c.l.b16 %v845
    %v924 = vunpack.c.l.b16 %v846
    %v925 = vunpack.c.h.b16 %v845
    %v926 = vunpack.c.h.b16 %v846
    %v927 = vunpack.c.l.b16 %v847
    %v928 = vunpack.c.l.b16 %v848
    %v929 = vunpack.c.h.b16 %v847
    %v930 = vunpack.c.h.b16 %v848
    %v931 = vunpack.c.l.b16 %v849
    %v932 = vunpack.c.l.b16 %v850
    %v933 = vunpack.c.h.b16 %v849
    %v934 = vunpack.c.h.b16 %v850
    %v935 = vunpack.c.l.b16 %v851
    %v936 = vunpack.c.l.b16 %v852
    %v937 = vunpack.c.h.b16 %v851
    %v938 = vunpack.c.h.b16 %v852
    %v939 = vunpack.c.l.b16 %v853
    %v940 = vunpack.c.l.b16 %v854
    %v941 = vunpack.c.h.b16 %v853
    %v942 = vunpack.c.h.b16 %v854
    %v943 = vunpack.c.l.b16 %v855
    %v944 = vunpack.c.l.b16 %v856
    %v945 = vunpack.c.h.b16 %v855
    %v946 = vunpack.c.h.b16 %v856
    %v947 = vunpack.c.l.b16 %v857
    %v948 = vunpack.c.l.b16 %v858
    %v949 = vunpack.c.h.b16 %v857
    %v950 = vunpack.c.h.b16 %v858
    %v951 = vunpack.c.l.b16 %v859
    %v952 = vunpack.c.l.b16 %v860
    %v953 = vunpack.c.h.b16 %v859
    %v954 = vunpack.c.h.b16 %v860
    %v955 = vunpack.c.l.b16 %v861
    %v956 = vunpack.c.l.b16 %v862
    %v957 = vunpack.c.h.b16 %v861
    %v958 = vunpack.c.h.b16 %v862
    %v959 = vpack.c.b16 %v896, %v895
    %v960 = vpack.c.b16 %v898, %v897
    %v961 = vpack.c.b16 %v900, %v899
    %v962 = vpack.c.b16 %v902, %v901
    %v963 = vpack.c.b16 %v904, %v903
    %v964 = vpack.c.b16 %v906, %v905
    %v965 = vpack.c.b16 %v908, %v907
    %v966 = vpack.c.b16 %v910, %v909
    %v967 = vpack.c.b16 %v912, %v911
    %v968 = vpack.c.b16 %v914, %v913
    %v969 = vpack.c.b16 %v916, %v915
    %v970 = vpack.c.b16 %v918, %v917
    %v971 = vpack.c.b16 %v920, %v919
    %v972 = vpack.c.b16 %v922, %v921
    %v973 = vpack.c.b16 %v924, %v923
    %v974 = vpack.c.b16 %v926, %v925
    %v975 = vpack.c.b16 %v928, %v927
    %v976 = vpack.c.b16 %v930, %v929
    %v977 = vpack.c.b16 %v932, %v931
    %v978 = vpack.c.b16 %v934, %v933
    %v979 = vpack.c.b16 %v936, %v935
    %v980 = vpack.c.b16 %v938, %v937
    %v981 = vpack.c.b16 %v940, %v939
    %v982 = vpack.c.b16 %v942, %v941
    %v983 = vpack.c.b16 %v944, %v943
    %v984 = vpack.c.b16 %v946, %v945
    %v985 = vpack.c.b16 %v948, %v947
    %v986 = vpack.c.b16 %v950, %v949
    %v987 = vpack.c.b16 %v952, %v951
    %v988 = vpack.c.b16 %v954, %v953
    %v989 = vpack.c.b16 %v956, %v955
    %v990 = vpack.c.b16 %v958, %v957
    %1023 = vst [vmem:[#allocation11] sm:$0xff] %v959
    %1024 = vst [vmem:[#allocation11 + $0x8] sm:$0xff] %v960
    %1025 = vst [vmem:[#allocation11 + $0x10] sm:$0xff] %v961
    %1026 = vst [vmem:[#allocation11 + $0x18] sm:$0xff] %v962
    %1027 = vst [vmem:[#allocation11 + $0x20] sm:$0xff] %v963
    %1028 = vst [vmem:[#allocation11 + $0x28] sm:$0xff] %v964
    %1029 = vst [vmem:[#allocation11 + $0x30] sm:$0xff] %v965
    %1030 = vst [vmem:[#allocation11 + $0x38] sm:$0xff] %v966
    %1031 = vst [vmem:[#allocation11 + $0x40] sm:$0xff] %v967
    %1032 = vst [vmem:[#allocation11 + $0x48] sm:$0xff] %v968
    %1033 = vst [vmem:[#allocation11 + $0x50] sm:$0xff] %v969
    %1034 = vst [vmem:[#allocation11 + $0x58] sm:$0xff] %v970
    %1035 = vst [vmem:[#allocation11 + $0x60] sm:$0xff] %v971
    %1036 = vst [vmem:[#allocation11 + $0x68] sm:$0xff] %v972
    %1037 = vst [vmem:[#allocation11 + $0x70] sm:$0xff] %v973
    %1038 = vst [vmem:[#allocation11 + $0x78] sm:$0xff] %v974
    %1039 = vst [vmem:[#allocation11 + $0x80] sm:$0xff] %v975
    %1040 = vst [vmem:[#allocation11 + $0x88] sm:$0xff] %v976
    %1041 = vst [vmem:[#allocation11 + $0x90] sm:$0xff] %v977
    %1042 = vst [vmem:[#allocation11 + $0x98] sm:$0xff] %v978
    %1043 = vst [vmem:[#allocation11 + $0xa0] sm:$0xff] %v979
    %1044 = vst [vmem:[#allocation11 + $0xa8] sm:$0xff] %v980
    %1045 = vst [vmem:[#allocation11 + $0xb0] sm:$0xff] %v981
    %1046 = vst [vmem:[#allocation11 + $0xb8] sm:$0xff] %v982
    %1047 = vst [vmem:[#allocation11 + $0xc0] sm:$0xff] %v983
    %1048 = vst [vmem:[#allocation11 + $0xc8] sm:$0xff] %v984
    %1049 = vst [vmem:[#allocation11 + $0xd0] sm:$0xff] %v985
    %1050 = vst [vmem:[#allocation11 + $0xd8] sm:$0xff] %v986
    %1051 = vst [vmem:[#allocation11 + $0xe0] sm:$0xff] %v987
    %1052 = vst [vmem:[#allocation11 + $0xe8] sm:$0xff] %v988
    %1053 = vst [vmem:[#allocation11 + $0xf0] sm:$0xff] %v989
    %1054 = vst [vmem:[#allocation11 + $0xf8] sm:$0xff] %v990
    // Predicated region
    $region42: #{tpu_custom_call.1} parent=1 // pred_check
      _
    $region43: #{tpu_custom_call.1} parent=1 // pred_check_branch
      %1056 = sbr.rel (0) target = $region45
    $region44: #{tpu_custom_call.1} parent=1 // pred_region
      %s1058 = ssub.s32 4096, 4096
      %1059 = vsyncadd [#allocation4], %s1058
      %s1060 = sshll.u32 [#allocation11], 4
      %s1061 = int_to_ptr.vmem [resolvable:$true] %s1060
      %1066 = dma.vmem_to_hbm [thread:$0]  %s1061, 4096, %s5, [#allocation4], 128, 128, 8
    $region45: #{tpu_custom_call.1} parent=1 // pred_fallthru
      _
    // Predicated region
    $region46: #{tpu_custom_call.1} parent=1 // pred_check
      _
    $region47: #{tpu_custom_call.1} parent=1 // pred_check_branch
      %1068 = sbr.rel (0) target = $region49
    $region48: #{tpu_custom_call.1} parent=1 // pred_region
      %1069 = dma.done [#allocation4], 4096
    $region49: #{tpu_custom_call.1} parent=1 // pred_fallthru
      _
    %1070 = vsyncpa [#allocation3], 1
    %1071 = vsyncpa [#allocation6], 1
    %1072 = vsyncpa [#allocation9], 1
    %1073 = vsyncpa [#allocation4], 1

</llo_original>
